<compile_context>
chip_gen: v7x
topology: tpu7x:2x2x1
jax: 0.10.0
libtpu: 0.0.40
codegen_flags: <defaults>
</compile_context>

<pallas_src>
import jax
import jax.numpy as jnp
from jax.experimental import pallas as pl
from jax.experimental.pallas import tpu as pltpu


# ----------------------------------------------------------------------------- kernel

def _ddqn_kernel(x_ref, w1_ref, b1_ref, w2_ref, b2_ref, w3_ref, b3_ref, o_ref):
    """One batch tile of the 3-layer MLP. Weights are whole (resident) blocks."""
    w1 = w1_ref[...]
    w2 = w2_ref[...]
    w3 = w3_ref[...]
    cdt = w1.dtype  # bf16 on the fast-MXU path, f32 otherwise

    # Layer 1: Linear + ReLU  (MXU matmul, f32 accumulate; bias/ReLU in f32 on VPU)
    x = x_ref[...].astype(cdt)
    h1 = jnp.dot(x, w1, preferred_element_type=jnp.float32)
    h1 = jnp.maximum(h1 + b1_ref[...], 0.0)

    # Layer 2: Linear + ReLU
    h2 = jnp.dot(h1.astype(cdt), w2, preferred_element_type=jnp.float32)
    h2 = jnp.maximum(h2 + b2_ref[...], 0.0)

    # Layer 3: Linear (raw Q-values), stored unpadded (narrow masked vst is
    # cheap; padding to 128 lanes would inflate HBM writeback ~32x).
    q = jnp.dot(h2.astype(cdt), w3, preferred_element_type=jnp.float32)
    o_ref[...] = (q + b3_ref[...]).astype(o_ref.dtype)


# ----------------------------------------------------------------------------- helpers

def _round_up(x, m):
    return ((x + m - 1) // m) * m


def _default_block_b(batch):
    """Batch tile: whole (sublane-padded) batch if it fits, else 2048 rows.

    Per-grid-step fixed cost (~0.35 us) dwarfs this kernel's compute, so use
    the biggest tile that comfortably fits VMEM (TB=2048 is only a few MiB
    double-buffered even with the merged dual-network weights)."""
    if batch <= 2048:
        return _round_up(max(batch, 8), 8)
    return 2048


def _vmem_limit_bytes(tb, d, h, a, x_itemsize, w_itemsize):
    weights = (d * h + h * h + h * a) * w_itemsize + (2 * h + a) * 4  # biases f32
    io_tiles = 2 * (tb * d * x_itemsize + tb * a * 4)                 # double-buffered x / Q
    intermediates = 2 * tb * h * 4                                    # h1, h2 in f32
    est = 2 * (weights + io_tiles + intermediates)                    # modest headroom
    # Cap well below v7x's 64 MiB physical VMEM per TensorCore.
    return int(min(48 * 1024 * 1024, max(8 * 1024 * 1024, est)))


def _prepare(params, compute_dtype):
    """Optionally cast weights to the MXU compute dtype; biases stay f32."""
    w1, b1 = params["w1"], params["b1"]
    w2, b2 = params["w2"], params["b2"]
    w3, b3 = params["w3"], params["b3"]
    if compute_dtype is not None and compute_dtype != jnp.float32:
        w1 = w1.astype(compute_dtype)
        w2 = w2.astype(compute_dtype)
        w3 = w3.astype(compute_dtype)
    return w1, b1, w2, b2, w3, b3


# ----------------------------------------------------------------------------- single network

def ddqn_forward(state, params, *, compute_dtype=None, block_b=None,
                 xla_fallback_batch=16):
    """state: [B, input_dims] f32. Returns Q-values [B, n_actions] in f32.

    compute_dtype=jnp.bfloat16 runs the three matmuls with bf16 operands and
    f32 accumulation — recommended on v5e, v6e and v7x (all bf16-native MXUs).
    Batches smaller than `xla_fallback_batch` use plain XLA (kernel launch
    overhead exceeds compute for this tiny MLP); pass 0 to force the kernel.
    """
    B, D = state.shape
    if xla_fallback_batch and B < xla_fallback_batch:
        return ddqn_reference(state, params)

    w1, b1, w2, b2, w3, b3 = _prepare(params, compute_dtype)
    H = w1.shape[1]
    A = w3.shape[1]

    if compute_dtype is not None and compute_dtype != jnp.float32:
        state = state.astype(compute_dtype)  # halve state DMA bytes

    TB = block_b if block_b is not None else _default_block_b(B)
    nb = pl.cdiv(B, TB)

    const = lambda i: (0, 0)  # weights/biases resident across batch tiles

    out = pl.pallas_call(
        _ddqn_kernel,
        out_shape=jax.ShapeDtypeStruct((B, A), jnp.float32),
        grid=(nb,),
        in_specs=[
            pl.BlockSpec((TB, D), lambda i: (i, 0)),
            pl.BlockSpec((D, H), const), pl.BlockSpec((1, H), const),
            pl.BlockSpec((H, H), const), pl.BlockSpec((1, H), const),
            pl.BlockSpec((H, A), const), pl.BlockSpec((1, A), const),
        ],
        out_specs=pl.BlockSpec((TB, A), lambda i: (i, 0)),
        compiler_params=pltpu.CompilerParams(
            dimension_semantics=("parallel",),  # v7x megacore: split batch tiles
            vmem_limit_bytes=_vmem_limit_bytes(
                TB, D, H, A, state.dtype.itemsize, w1.dtype.itemsize),
        ),
    )(state, w1, b1, w2, b2, w3, b3)

    return out


# ----------------------------------------------------------------------------- fused online + target

def _merge_dual_params(params_online, params_target):
    """Merge online/target nets into ONE 3-layer MLP:
       layer 1: [D, 2H] (concat), layers 2/3: block-diagonal [2H, 2H] / [2H, 2A].
    One grid pass reads the state once and fills the 256-wide MXU on v6e/v7x."""
    w1o, b1o, w2o, b2o, w3o, b3o = (params_online[k] for k in
                                    ("w1", "b1", "w2", "b2", "w3", "b3"))
    w1t, b1t, w2t, b2t, w3t, b3t = (params_target[k] for k in
                                    ("w1", "b1", "w2", "b2", "w3", "b3"))
    H = w1o.shape[1]
    A = w3o.shape[1]
    dt = w1o.dtype

    zHH = jnp.zeros((H, H), dt)
    zHA = jnp.zeros((H, A), dt)
    return {
        "w1": jnp.concatenate([w1o, w1t], axis=1),                     # (D, 2H)
        "b1": jnp.concatenate([b1o, b1t], axis=1),                     # (1, 2H)
        "w2": jnp.concatenate(
            [jnp.concatenate([w2o, zHH], axis=1),
             jnp.concatenate([zHH, w2t], axis=1)], axis=0),            # (2H, 2H)
        "b2": jnp.concatenate([b2o, b2t], axis=1),                     # (1, 2H)
        "w3": jnp.concatenate(
            [jnp.concatenate([w3o, zHA], axis=1),
             jnp.concatenate([zHA, w3t], axis=1)], axis=0),            # (2H, 2A)
        "b3": jnp.concatenate([b3o, b3t], axis=1),                     # (1, 2A)
    }


def ddqn_dual_forward(state, params_online, params_target, *,
                      compute_dtype=None, block_b=None, xla_fallback_batch=16):
    """Evaluate online and target networks on the same state batch with a
    single pallas_call and a single grid pass over the batch.
    Returns (q_online, q_target), each [B, n_actions] f32."""
    B, _ = state.shape
    A = params_online["w3"].shape[1]

    if xla_fallback_batch and B < xla_fallback_batch:
        return (ddqn_reference(state, params_online),
                ddqn_reference(state, params_target))

    merged = _merge_dual_params(params_online, params_target)
    q = ddqn_forward(state, merged, compute_dtype=compute_dtype,
                     block_b=block_b, xla_fallback_batch=0)  # [B, 2A]
    return q[:, :A], q[:, A:]

# TODO(synk): the full DDQN target epilogue (argmax over online Q + gather of
# target Q) could be fused into the kernel to skip the Q writeback entirely;
# left out to keep the module's forward() semantics.


# ----------------------------------------------------------------------------- params / reference

def init_params(key, input_dims, n_actions, hidden=128):
    """Shapes match the PyTorch module; weights stored as [in, out] (W.T)."""
    k1, k2, k3, k4, k5, k6 = jax.random.split(key, 6)

    def u(k, fan_in, shape):  # PyTorch nn.Linear default: U(-1/sqrt(fan_in), 1/sqrt(fan_in))
        bound = 1.0 / jnp.sqrt(jnp.float32(fan_in))
        return jax.random.uniform(k, shape, jnp.float32, -bound, bound)

    return {
        "w1": u(k1, input_dims, (input_dims, hidden)),
        "b1": u(k2, input_dims, (1, hidden)),
        "w2": u(k3, hidden, (hidden, hidden)),
        "b2": u(k4, hidden, (1, hidden)),
        "w3": u(k5, hidden, (hidden, n_actions)),
        "b3": u(k6, hidden, (1, n_actions)),
    }


def ddqn_reference(state, params):
    h1 = jnp.maximum(state @ params["w1"] + params["b1"], 0.0)
    h2 = jnp.maximum(h1 @ params["w2"] + params["b2"], 0.0)
    return h2 @ params["w3"] + params["b3"]


# TODO(synk): optimizer (Adam) and MSELoss from the PyTorch module are training
# machinery, not part of forward(); not implemented as kernels.

# ----------------------------------------------------------------------------- test

if __name__ == "__main__":
    key = jax.random.PRNGKey(0)
    k_params, k_target, k_state, k_state_big = jax.random.split(key, 4)

    batch, input_dims, n_actions = 8, 16, 4
    params = init_params(k_params, input_dims, n_actions)
    target_params = init_params(k_target, input_dims, n_actions)
    state = jax.random.normal(k_state, (batch, input_dims), jnp.float32)
    q_ref = ddqn_reference(state, params)

    # f32 kernel path (exact vs reference); xla_fallback_batch=0 forces the kernel
    q = jax.block_until_ready(ddqn_forward(state, params, xla_fallback_batch=0))
    assert q.shape == (batch, n_actions)
    assert jnp.allclose(q, q_ref, atol=1e-5, rtol=1e-5), "f32 path mismatch"

    # bf16 MXU-operand path (recommended on v5e/v6e/v7x), f32 accumulation
    q_bf16 = jax.block_until_ready(
        ddqn_forward(state, params, compute_dtype=jnp.bfloat16, xla_fallback_batch=0))
    assert jnp.allclose(q_bf16, q_ref, atol=5e-2, rtol=5e-2), "bf16 path mismatch"

    # Multi-tile batch grid with a partial last tile (pipelined state/Q tiles)
    big_state = jax.random.normal(k_state_big, (200, input_dims), jnp.float32)
    q_big = jax.block_until_ready(ddqn_forward(big_state, params, block_b=64))
    assert jnp.allclose(q_big, ddqn_reference(big_state, params),
                        atol=1e-5, rtol=1e-5), "tiled path mismatch"

    # Default (full-batch) tile path
    q_big2 = jax.block_until_ready(ddqn_forward(big_state, params))
    assert jnp.allclose(q_big2, ddqn_reference(big_state, params),
                        atol=1e-5, rtol=1e-5), "full-batch tile mismatch"

    # Fused online + target evaluation: one pallas_call, one grid pass
    q_on, q_tg = ddqn_dual_forward(state, params, target_params, xla_fallback_batch=0)
    jax.block_until_ready((q_on, q_tg))
    assert jnp.allclose(q_on, q_ref, atol=1e-5, rtol=1e-5), "dual online mismatch"
    assert jnp.allclose(q_tg, ddqn_reference(state, target_params),
                        atol=1e-5, rtol=1e-5), "dual target mismatch"

    # Small-batch XLA fallback (action selection path)
    q_small = jax.block_until_ready(ddqn_forward(state, params))  # B=8 < 16 -> XLA
    assert jnp.allclose(q_small, q_ref, atol=1e-5, rtol=1e-5), "fallback mismatch"

    print("KERNEL_OK")
</pallas_src>

<mosaic_0001>
module attributes {stable_mosaic.version = 11 : i64} {
  func.func @_ddqn_kernel(%arg0: i32, %arg1: memref<8x16xf32, #tpu.memory_space<vmem>>, %arg2: memref<16x128xf32, #tpu.memory_space<vmem>>, %arg3: memref<1x128xf32, #tpu.memory_space<vmem>>, %arg4: memref<128x128xf32, #tpu.memory_space<vmem>>, %arg5: memref<1x128xf32, #tpu.memory_space<vmem>>, %arg6: memref<128x4xf32, #tpu.memory_space<vmem>>, %arg7: memref<1x4xf32, #tpu.memory_space<vmem>>, %arg8: memref<8x4xf32, #tpu.memory_space<vmem>>) attributes {dimension_semantics = [#tpu.dimension_semantics<parallel>], iteration_bounds = array<i64: 1>, scalar_prefetch = 0 : i64, scratch_operands = 0 : i64, tpu.core_type = #tpu.core_type<tc>, window_params = [{transform_indices = @transform_0, window_bounds = array<i64: 8, 16>}, {pipeline_mode = #tpu.pipeline_mode<synchronous>, transform_indices = @transform_1, window_bounds = array<i64: 16, 128>}, {pipeline_mode = #tpu.pipeline_mode<synchronous>, transform_indices = @transform_2, window_bounds = array<i64: 1, 128>}, {pipeline_mode = #tpu.pipeline_mode<synchronous>, transform_indices = @transform_3, window_bounds = array<i64: 128, 128>}, {pipeline_mode = #tpu.pipeline_mode<synchronous>, transform_indices = @transform_4, window_bounds = array<i64: 1, 128>}, {pipeline_mode = #tpu.pipeline_mode<synchronous>, transform_indices = @transform_5, window_bounds = array<i64: 128, 4>}, {pipeline_mode = #tpu.pipeline_mode<synchronous>, transform_indices = @transform_6, window_bounds = array<i64: 1, 4>}, {transform_indices = @transform_7, window_bounds = array<i64: 8, 4>}]} {
    %c0 = arith.constant 0 : index
    %c0_0 = arith.constant 0 : index
    %0 = vector.load %arg2[%c0, %c0_0] : memref<16x128xf32, #tpu.memory_space<vmem>>, vector<16x128xf32>
    %c0_1 = arith.constant 0 : index
    %c0_2 = arith.constant 0 : index
    %1 = vector.load %arg4[%c0_1, %c0_2] : memref<128x128xf32, #tpu.memory_space<vmem>>, vector<128x128xf32>
    %c0_3 = arith.constant 0 : index
    %c0_4 = arith.constant 0 : index
    %2 = vector.load %arg6[%c0_3, %c0_4] : memref<128x4xf32, #tpu.memory_space<vmem>>, vector<128x4xf32>
    %c0_5 = arith.constant 0 : index
    %c0_6 = arith.constant 0 : index
    %3 = vector.load %arg1[%c0_5, %c0_6] : memref<8x16xf32, #tpu.memory_space<vmem>>, vector<8x16xf32>
    %cst = arith.constant dense<0.000000e+00> : vector<8x128xf32>
    %4 = tpu.matmul %3, %0, %cst {dimension_numbers = #tpu.dot_dimension_numbers<[1], [0], [0], [1], [0, 0, 1, 1], [], []>} : vector<8x16xf32>, vector<16x128xf32>, vector<8x128xf32> -> vector<8x128xf32>
    %c0_7 = arith.constant 0 : index
    %c0_8 = arith.constant 0 : index
    %5 = vector.load %arg3[%c0_7, %c0_8] : memref<1x128xf32, #tpu.memory_space<vmem>>, vector<1x128xf32>
    %6 = vector.broadcast %5 : vector<1x128xf32> to vector<8x128xf32>
    %7 = arith.addf %4, %6 : vector<8x128xf32>
    %cst_9 = arith.constant 0.000000e+00 : f32
    %8 = vector.broadcast %cst_9 : f32 to vector<8x128xf32>
    %9 = arith.maximumf %7, %8 : vector<8x128xf32>
    %cst_10 = arith.constant dense<0.000000e+00> : vector<8x128xf32>
    %10 = tpu.matmul %9, %1, %cst_10 {dimension_numbers = #tpu.dot_dimension_numbers<[1], [0], [0], [1], [0, 0, 1, 1], [], []>} : vector<8x128xf32>, vector<128x128xf32>, vector<8x128xf32> -> vector<8x128xf32>
    %c0_11 = arith.constant 0 : index
    %c0_12 = arith.constant 0 : index
    %11 = vector.load %arg5[%c0_11, %c0_12] : memref<1x128xf32, #tpu.memory_space<vmem>>, vector<1x128xf32>
    %12 = vector.broadcast %11 : vector<1x128xf32> to vector<8x128xf32>
    %13 = arith.addf %10, %12 : vector<8x128xf32>
    %cst_13 = arith.constant 0.000000e+00 : f32
    %14 = vector.broadcast %cst_13 : f32 to vector<8x128xf32>
    %15 = arith.maximumf %13, %14 : vector<8x128xf32>
    %cst_14 = arith.constant dense<0.000000e+00> : vector<8x4xf32>
    %16 = tpu.matmul %15, %2, %cst_14 {dimension_numbers = #tpu.dot_dimension_numbers<[1], [0], [0], [1], [0, 0, 1, 1], [], []>} : vector<8x128xf32>, vector<128x4xf32>, vector<8x4xf32> -> vector<8x4xf32>
    %c0_15 = arith.constant 0 : index
    %c0_16 = arith.constant 0 : index
    %17 = vector.load %arg7[%c0_15, %c0_16] : memref<1x4xf32, #tpu.memory_space<vmem>>, vector<1x4xf32>
    %18 = vector.broadcast %17 : vector<1x4xf32> to vector<8x4xf32>
    %19 = arith.addf %16, %18 : vector<8x4xf32>
    %c0_17 = arith.constant 0 : index
    %c0_18 = arith.constant 0 : index
    %20 = vector.load %arg8[%c0_17, %c0_18] : memref<8x4xf32, #tpu.memory_space<vmem>>, vector<8x4xf32>
    tpu.vector_store %arg8[%c0_17, %c0_18], %19 {strides = array<i32>} : memref<8x4xf32, #tpu.memory_space<vmem>>, vector<8x4xf32>,
    return
  }
  func.func @transform_0(%arg0: i32) -> (i32, i32) {
    %c0_i32 = arith.constant 0 : i32
    %c0_i32_0 = arith.constant 0 : i32
    return %arg0, %c0_i32 : i32, i32
  }
  func.func @transform_1(%arg0: i32) -> (i32, i32) {
    %c0_i32 = arith.constant 0 : i32
    %c0_i32_0 = arith.constant 0 : i32
    %c0_i32_1 = arith.constant 0 : i32
    return %c0_i32, %c0_i32_0 : i32, i32
  }
  func.func @transform_2(%arg0: i32) -> (i32, i32) {
    %c0_i32 = arith.constant 0 : i32
    %c0_i32_0 = arith.constant 0 : i32
    %c0_i32_1 = arith.constant 0 : i32
    return %c0_i32, %c0_i32_0 : i32, i32
  }
  func.func @transform_3(%arg0: i32) -> (i32, i32) {
    %c0_i32 = arith.constant 0 : i32
    %c0_i32_0 = arith.constant 0 : i32
    %c0_i32_1 = arith.constant 0 : i32
    return %c0_i32, %c0_i32_0 : i32, i32
  }
  func.func @transform_4(%arg0: i32) -> (i32, i32) {
    %c0_i32 = arith.constant 0 : i32
    %c0_i32_0 = arith.constant 0 : i32
    %c0_i32_1 = arith.constant 0 : i32
    return %c0_i32, %c0_i32_0 : i32, i32
  }
  func.func @transform_5(%arg0: i32) -> (i32, i32) {
    %c0_i32 = arith.constant 0 : i32
    %c0_i32_0 = arith.constant 0 : i32
    %c0_i32_1 = arith.constant 0 : i32
    return %c0_i32, %c0_i32_0 : i32, i32
  }
  func.func @transform_6(%arg0: i32) -> (i32, i32) {
    %c0_i32 = arith.constant 0 : i32
    %c0_i32_0 = arith.constant 0 : i32
    %c0_i32_1 = arith.constant 0 : i32
    return %c0_i32, %c0_i32_0 : i32, i32
  }
  func.func @transform_7(%arg0: i32) -> (i32, i32) {
    %c0_i32 = arith.constant 0 : i32
    %c0_i32_0 = arith.constant 0 : i32
    return %arg0, %c0_i32 : i32, i32
  }
}

</mosaic_0001>

<llo_original>
// kernel: tpu_custom_call.1
$region0: #{tpu_custom_call.1}
  #allocation0 [shape = 'u32[]', space=smem, size = 0x4, offset = 0x4, fixed_abs, tag = 'smem constant byte address 0x4 - core index']
  #allocation1 [shape = 'u32[144,128]{1,0:T(1,128)}', space=vmem, size = 0x12000, scoped, tag = 'internal scratch']
  %s0 = inlined_call_operand.vmem [shape: f32[8,16], index: 0, kind: input, shape index: {}]
  %s1 = inlined_call_operand.hbm [shape: f32[16,128], index: 1, kind: input, shape index: {}]
  %s2 = inlined_call_operand.vmem [shape: f32[1,128], index: 2, kind: input, shape index: {}]
  %s3 = inlined_call_operand.vmem [shape: f32[128,128], index: 3, kind: input, shape index: {}]
  %s4 = inlined_call_operand.vmem [shape: f32[1,128], index: 4, kind: input, shape index: {}]
  %s5 = inlined_call_operand.vmem [shape: f32[128,4], index: 5, kind: input, shape index: {}]
  %s6 = inlined_call_operand.vmem [shape: f32[1,4], index: 6, kind: input, shape index: {}]
  %s7 = inlined_call_operand.vmem [shape: f32[8,4], index: 7, kind: output, shape index: {}]
  %s8 = sld [smem:[#allocation0]]
  $region42: #{tpu_custom_call.1} parent=0
    _
  %s10 = ssub.s32 1, %s8
  %s11 = scalar_select 0, %s10, %s8
  $region1: #{tpu_custom_call.1} parent=0
    #allocation2 [shape = 'u8[8192]{0}', space=vmem, size = 0x2000, scoped, tag = 'input window, operand 1, single buffered']
    #allocation3 [shape = 's32[1]{0}', space=sflag, size = 0x4, scoped, tag = 'scoped memory for tpu_custom_call.1']
    %12 = vsyncpa [#allocation3], 0
    // Predicated region
    $region2: #{tpu_custom_call.1} parent=1 // pred_check
      _
    $region3: #{tpu_custom_call.1} parent=1 // pred_check_branch
      %14 = sbr.rel (0) target = $region5
    $region4: #{tpu_custom_call.1} parent=1 // pred_region
      _
    $region5: #{tpu_custom_call.1} parent=1 // pred_fallthru
      _
    // Predicated region
    $region6: #{tpu_custom_call.1} parent=1 // pred_check
      _
    $region7: #{tpu_custom_call.1} parent=1 // pred_check_branch
      %16 = sbr.rel (0) target = $region9
    $region8: #{tpu_custom_call.1} parent=1 // pred_region
      %s18 = ssub.s32 256, 256
      %19 = vsyncadd [#allocation3], %s18
      %s20 = sshll.u32 [#allocation2], 4
      %s21 = int_to_ptr.vmem [resolvable:$true] %s20
      %26 = dma.hbm_to_vmem [thread:$0]  %s1, 256, %s21, [#allocation3], 128, 128, 8
    $region9: #{tpu_custom_call.1} parent=1 // pred_fallthru
      _
    // Predicated region
    $region10: #{tpu_custom_call.1} parent=1 // pred_check
      _
    $region11: #{tpu_custom_call.1} parent=1 // pred_check_branch
      %28 = sbr.rel (0) target = $region13
    $region12: #{tpu_custom_call.1} parent=1 // pred_region
      _
    $region13: #{tpu_custom_call.1} parent=1 // pred_fallthru
      _
    // Predicated region
    $region14: #{tpu_custom_call.1} parent=1 // pred_check
      _
    $region15: #{tpu_custom_call.1} parent=1 // pred_check_branch
      %30 = sbr.rel (0) target = $region17
    $region16: #{tpu_custom_call.1} parent=1 // pred_region
      _
    $region17: #{tpu_custom_call.1} parent=1 // pred_fallthru
      _
    // Predicated region
    $region18: #{tpu_custom_call.1} parent=1 // pred_check
      _
    $region19: #{tpu_custom_call.1} parent=1 // pred_check_branch
      %32 = sbr.rel (0) target = $region21
    $region20: #{tpu_custom_call.1} parent=1 // pred_region
      _
    $region21: #{tpu_custom_call.1} parent=1 // pred_fallthru
      _
    // Predicated region
    $region22: #{tpu_custom_call.1} parent=1 // pred_check
      _
    $region23: #{tpu_custom_call.1} parent=1 // pred_check_branch
      %34 = sbr.rel (0) target = $region25
    $region24: #{tpu_custom_call.1} parent=1 // pred_region
      _
    $region25: #{tpu_custom_call.1} parent=1 // pred_fallthru
      _
    // Predicated region
    $region26: #{tpu_custom_call.1} parent=1 // pred_check
      _
    $region27: #{tpu_custom_call.1} parent=1 // pred_check_branch
      %36 = sbr.rel (0) target = $region29
    $region28: #{tpu_custom_call.1} parent=1 // pred_region
      _
    $region29: #{tpu_custom_call.1} parent=1 // pred_fallthru
      _
    // Predicated region
    $region30: #{tpu_custom_call.1} parent=1 // pred_check
      _
    $region31: #{tpu_custom_call.1} parent=1 // pred_check_branch
      %38 = sbr.rel (0) target = $region33
    $region32: #{tpu_custom_call.1} parent=1 // pred_region
      %39 = dma.done [#allocation3], 256
    $region33: #{tpu_custom_call.1} parent=1 // pred_fallthru
      _
    %v40 = vld [vmem:[#allocation2] sm:$0xff]
    %v41 = vld [vmem:[#allocation2 + $0x8] sm:$0xff]
    %v42 = vld [vmem:[%s3] sm:$0xff]
    %v43 = vld [vmem:[%s3 + $0x8] sm:$0xff]
    %v44 = vld [vmem:[%s3 + $0x10] sm:$0xff]
    %v45 = vld [vmem:[%s3 + $0x18] sm:$0xff]
    %v46 = vld [vmem:[%s3 + $0x20] sm:$0xff]
    %v47 = vld [vmem:[%s3 + $0x28] sm:$0xff]
    %v48 = vld [vmem:[%s3 + $0x30] sm:$0xff]
    %v49 = vld [vmem:[%s3 + $0x38] sm:$0xff]
    %v50 = vld [vmem:[%s3 + $0x40] sm:$0xff]
    %v51 = vld [vmem:[%s3 + $0x48] sm:$0xff]
    %v52 = vld [vmem:[%s3 + $0x50] sm:$0xff]
    %v53 = vld [vmem:[%s3 + $0x58] sm:$0xff]
    %v54 = vld [vmem:[%s3 + $0x60] sm:$0xff]
    %v55 = vld [vmem:[%s3 + $0x68] sm:$0xff]
    %v56 = vld [vmem:[%s3 + $0x70] sm:$0xff]
    %v57 = vld [vmem:[%s3 + $0x78] sm:$0xff]
    %v58 = vld [vmem:[%s5] sm:$0xff]
    %v59 = vld [vmem:[%s5 + $0x8] sm:$0xff]
    %v60 = vld [vmem:[%s5 + $0x10] sm:$0xff]
    %v61 = vld [vmem:[%s5 + $0x18] sm:$0xff]
    %v62 = vld [vmem:[%s5 + $0x20] sm:$0xff]
    %v63 = vld [vmem:[%s5 + $0x28] sm:$0xff]
    %v64 = vld [vmem:[%s5 + $0x30] sm:$0xff]
    %v65 = vld [vmem:[%s5 + $0x38] sm:$0xff]
    %v66 = vld [vmem:[%s5 + $0x40] sm:$0xff]
    %v67 = vld [vmem:[%s5 + $0x48] sm:$0xff]
    %v68 = vld [vmem:[%s5 + $0x50] sm:$0xff]
    %v69 = vld [vmem:[%s5 + $0x58] sm:$0xff]
    %v70 = vld [vmem:[%s5 + $0x60] sm:$0xff]
    %v71 = vld [vmem:[%s5 + $0x68] sm:$0xff]
    %v72 = vld [vmem:[%s5 + $0x70] sm:$0xff]
    %v73 = vld [vmem:[%s5 + $0x78] sm:$0xff]
    %v74 = vld [vmem:[%s0] sm:$0xff]
    %v75 = vld [vmem:[%s2] sm:$0x1]
    %v77 = vlaneseq
    %v78 = vshrl.u32 %v77, 7
    %v79 = vsub.s32 0, %v78
    %v80 = vrot.slane %v75, %v79
    %vm82 = vcmask 130048
    %v84 = vsel %vm82, %v74, 0
    %86 = vmatprep.subr.mxu0 0.0
    %87 = vmatpush1.msra.mxu0 %v40
    %88 = vmatprep.subr.mxu0 0.0
    %89 = vmatpush1.msra.mxu0 %v41
    %90 = vmatprep.subr.mxu0 0.0
    %91 = vmatpush1.msra.mxu0 0.0
    %92 = vmatprep.subr.mxu0 0.0
    %93 = vmatpush1.msra.mxu0 0.0
    %94 = vmatprep.subr.mxu0 0.0
    %95 = vmatpush1.msra.mxu0 0.0
    %96 = vmatprep.subr.mxu0 0.0
    %97 = vmatpush1.msra.mxu0 0.0
    %98 = vmatprep.subr.mxu0 0.0
    %99 = vmatpush1.msra.mxu0 0.0
    %100 = vmatprep.subr.mxu0 0.0
    %101 = vmatpush1.msra.mxu0 0.0
    %102 = vmatprep.subr.mxu0 0.0
    %103 = vmatpush1.msra.mxu0 0.0
    %104 = vmatprep.subr.mxu0 0.0
    %105 = vmatpush1.msra.mxu0 0.0
    %106 = vmatprep.subr.mxu0 0.0
    %107 = vmatpush1.msra.mxu0 0.0
    %108 = vmatprep.subr.mxu0 0.0
    %109 = vmatpush1.msra.mxu0 0.0
    %110 = vmatprep.subr.mxu0 0.0
    %111 = vmatpush1.msra.mxu0 0.0
    %112 = vmatprep.subr.mxu0 0.0
    %113 = vmatpush1.msra.mxu0 0.0
    %114 = vmatprep.subr.mxu0 0.0
    %115 = vmatpush1.msra.mxu0 0.0
    %116 = vmatprep.subr.mxu0 0.0
    %117 = vmatpush1.msra.mxu0 0.0
    %118 = vmatprep.subr.mxu0 0.0
    %119 = vmatpush1.msra.mxu0 0.0
    %120 = vmatprep.subr.mxu0 0.0
    %121 = vmatpush1.msra.mxu0 0.0
    %122 = vmatprep.subr.mxu0 0.0
    %123 = vmatpush1.msra.mxu0 0.0
    %124 = vmatprep.subr.mxu0 0.0
    %125 = vmatpush1.msra.mxu0 0.0
    %126 = vmatprep.subr.mxu0 0.0
    %127 = vmatpush1.msra.mxu0 0.0
    %128 = vmatprep.subr.mxu0 0.0
    %129 = vmatpush1.msra.mxu0 0.0
    %130 = vmatprep.subr.mxu0 0.0
    %131 = vmatpush1.msra.mxu0 0.0
    %132 = vmatprep.subr.mxu0 0.0
    %133 = vmatpush1.msra.mxu0 0.0
    %134 = vmatprep.subr.mxu0 0.0
    %135 = vmatpush1.msra.mxu0 0.0
    %136 = vmatprep.subr.mxu0 0.0
    %137 = vmatpush1.msra.mxu0 0.0
    %138 = vmatprep.subr.mxu0 0.0
    %139 = vmatpush1.msra.mxu0 0.0
    %140 = vmatprep.subr.mxu0 0.0
    %141 = vmatpush1.msra.mxu0 0.0
    %142 = vmatprep.subr.mxu0 0.0
    %143 = vmatpush1.msra.mxu0 0.0
    %144 = vmatprep.subr.mxu0 0.0
    %145 = vmatpush1.msra.mxu0 0.0
    %146 = vmatprep.subr.mxu0 0.0
    %147 = vmatpush1.msra.mxu0 0.0
    %148 = vmatprep.subr.mxu0 0.0
    %149 = vmatpush1.msra.mxu0 0.0
    %150 = vmatprep.mubr.f32.mxu0 0.0
    %151 = vmatmul.mubr.f32.gmra.mrb[0].mxu0 %v84
    %v152 = vpop.f32.mrb[0].mxu0
    %v153 = vadd.f32 %v80, %v152
    %v154 = vpop.f32.mrb[0].mxu0
    %155 = vdwg.mxu0
    %v156 = vmax.f32 %v153, 0.0
    %v157 = vld [vmem:[%s4] sm:$0x1]
    %v159 = vlaneseq
    %v160 = vshrl.u32 %v159, 7
    %v161 = vsub.s32 0, %v160
    %v162 = vrot.slane %v157, %v161
    %164 = vmatprep.subr.mxu0 0.0
    %165 = vmatpush1.msra.mxu0 %v42
    %166 = vmatprep.subr.mxu0 0.0
    %167 = vmatpush1.msra.mxu0 %v43
    %168 = vmatprep.subr.mxu0 0.0
    %169 = vmatpush1.msra.mxu0 %v44
    %170 = vmatprep.subr.mxu0 0.0
    %171 = vmatpush1.msra.mxu0 %v45
    %172 = vmatprep.subr.mxu0 0.0
    %173 = vmatpush1.msra.mxu0 %v46
    %174 = vmatprep.subr.mxu0 0.0
    %175 = vmatpush1.msra.mxu0 %v47
    %176 = vmatprep.subr.mxu0 0.0
    %177 = vmatpush1.msra.mxu0 %v48
    %178 = vmatprep.subr.mxu0 0.0
    %179 = vmatpush1.msra.mxu0 %v49
    %180 = vmatprep.subr.mxu0 0.0
    %181 = vmatpush1.msra.mxu0 %v50
    %182 = vmatprep.subr.mxu0 0.0
    %183 = vmatpush1.msra.mxu0 %v51
    %184 = vmatprep.subr.mxu0 0.0
    %185 = vmatpush1.msra.mxu0 %v52
    %186 = vmatprep.subr.mxu0 0.0
    %187 = vmatpush1.msra.mxu0 %v53
    %188 = vmatprep.subr.mxu0 0.0
    %189 = vmatpush1.msra.mxu0 %v54
    %190 = vmatprep.subr.mxu0 0.0
    %191 = vmatpush1.msra.mxu0 %v55
    %192 = vmatprep.subr.mxu0 0.0
    %193 = vmatpush1.msra.mxu0 %v56
    %194 = vmatprep.subr.mxu0 0.0
    %195 = vmatpush1.msra.mxu0 %v57
    %196 = vmatprep.subr.mxu0 0.0
    %197 = vmatpush1.msra.mxu0 0.0
    %198 = vmatprep.subr.mxu0 0.0
    %199 = vmatpush1.msra.mxu0 0.0
    %200 = vmatprep.subr.mxu0 0.0
    %201 = vmatpush1.msra.mxu0 0.0
    %202 = vmatprep.subr.mxu0 0.0
    %203 = vmatpush1.msra.mxu0 0.0
    %204 = vmatprep.subr.mxu0 0.0
    %205 = vmatpush1.msra.mxu0 0.0
    %206 = vmatprep.subr.mxu0 0.0
    %207 = vmatpush1.msra.mxu0 0.0
    %208 = vmatprep.subr.mxu0 0.0
    %209 = vmatpush1.msra.mxu0 0.0
    %210 = vmatprep.subr.mxu0 0.0
    %211 = vmatpush1.msra.mxu0 0.0
    %212 = vmatprep.subr.mxu0 0.0
    %213 = vmatpush1.msra.mxu0 0.0
    %214 = vmatprep.subr.mxu0 0.0
    %215 = vmatpush1.msra.mxu0 0.0
    %216 = vmatprep.subr.mxu0 0.0
    %217 = vmatpush1.msra.mxu0 0.0
    %218 = vmatprep.subr.mxu0 0.0
    %219 = vmatpush1.msra.mxu0 0.0
    %220 = vmatprep.subr.mxu0 0.0
    %221 = vmatpush1.msra.mxu0 0.0
    %222 = vmatprep.subr.mxu0 0.0
    %223 = vmatpush1.msra.mxu0 0.0
    %224 = vmatprep.subr.mxu0 0.0
    %225 = vmatpush1.msra.mxu0 0.0
    %226 = vmatprep.subr.mxu0 0.0
    %227 = vmatpush1.msra.mxu0 0.0
    %228 = vmatprep.mubr.f32.mxu0 0.0
    %229 = vmatmul.mubr.f32.gmra.mrb[0].mxu0 %v156
    %v230 = vpop.f32.mrb[0].mxu0
    %v231 = vadd.f32 %v162, %v230
    %v232 = vpop.f32.mrb[0].mxu0
    %233 = vdwg.mxu0
    %v234 = vmax.f32 %v231, 0.0
    %v235 = vld [vmem:[%s6] sm:$0x1]
    %v237 = vlaneseq
    %v238 = vshrl.u32 %v237, 7
    %v239 = vsub.s32 0, %v238
    %v240 = vrot.slane %v235, %v239
    %242 = vmatprep.subr.mxu0 0.0
    %243 = vmatpush1.msra.mxu0 %v58
    %244 = vmatprep.subr.mxu0 0.0
    %245 = vmatpush1.msra.mxu0 %v59
    %246 = vmatprep.subr.mxu0 0.0
    %247 = vmatpush1.msra.mxu0 %v60
    %248 = vmatprep.subr.mxu0 0.0
    %249 = vmatpush1.msra.mxu0 %v61
    %250 = vmatprep.subr.mxu0 0.0
    %251 = vmatpush1.msra.mxu0 %v62
    %252 = vmatprep.subr.mxu0 0.0
    %253 = vmatpush1.msra.mxu0 %v63
    %254 = vmatprep.subr.mxu0 0.0
    %255 = vmatpush1.msra.mxu0 %v64
    %256 = vmatprep.subr.mxu0 0.0
    %257 = vmatpush1.msra.mxu0 %v65
    %258 = vmatprep.subr.mxu0 0.0
    %259 = vmatpush1.msra.mxu0 %v66
    %260 = vmatprep.subr.mxu0 0.0
    %261 = vmatpush1.msra.mxu0 %v67
    %262 = vmatprep.subr.mxu0 0.0
    %263 = vmatpush1.msra.mxu0 %v68
    %264 = vmatprep.subr.mxu0 0.0
    %265 = vmatpush1.msra.mxu0 %v69
    %266 = vmatprep.subr.mxu0 0.0
    %267 = vmatpush1.msra.mxu0 %v70
    %268 = vmatprep.subr.mxu0 0.0
    %269 = vmatpush1.msra.mxu0 %v71
    %270 = vmatprep.subr.mxu0 0.0
    %271 = vmatpush1.msra.mxu0 %v72
    %272 = vmatprep.subr.mxu0 0.0
    %273 = vmatpush1.msra.mxu0 %v73
    %274 = vmatprep.subr.mxu0 0.0
    %275 = vmatpush1.msra.mxu0 0.0
    %276 = vmatprep.subr.mxu0 0.0
    %277 = vmatpush1.msra.mxu0 0.0
    %278 = vmatprep.subr.mxu0 0.0
    %279 = vmatpush1.msra.mxu0 0.0
    %280 = vmatprep.subr.mxu0 0.0
    %281 = vmatpush1.msra.mxu0 0.0
    %282 = vmatprep.subr.mxu0 0.0
    %283 = vmatpush1.msra.mxu0 0.0
    %284 = vmatprep.subr.mxu0 0.0
    %285 = vmatpush1.msra.mxu0 0.0
    %286 = vmatprep.subr.mxu0 0.0
    %287 = vmatpush1.msra.mxu0 0.0
    %288 = vmatprep.subr.mxu0 0.0
    %289 = vmatpush1.msra.mxu0 0.0
    %290 = vmatprep.subr.mxu0 0.0
    %291 = vmatpush1.msra.mxu0 0.0
    %292 = vmatprep.subr.mxu0 0.0
    %293 = vmatpush1.msra.mxu0 0.0
    %294 = vmatprep.subr.mxu0 0.0
    %295 = vmatpush1.msra.mxu0 0.0
    %296 = vmatprep.subr.mxu0 0.0
    %297 = vmatpush1.msra.mxu0 0.0
    %298 = vmatprep.subr.mxu0 0.0
    %299 = vmatpush1.msra.mxu0 0.0
    %300 = vmatprep.subr.mxu0 0.0
    %301 = vmatpush1.msra.mxu0 0.0
    %302 = vmatprep.subr.mxu0 0.0
    %303 = vmatpush1.msra.mxu0 0.0
    %304 = vmatprep.subr.mxu0 0.0
    %305 = vmatpush1.msra.mxu0 0.0
    %306 = vmatprep.mubr.f32.mxu0 0.0
    %307 = vmatmul.mubr.f32.gmra.mrb[0].mxu0 %v234
    %v308 = vpop.f32.mrb[0].mxu0
    %v309 = vadd.f32 %v240, %v308
    %v310 = vpop.f32.mrb[0].mxu0
    %311 = vdwg.mxu0
    %vm312 = vcmask 31744
    %313 = vst.msk [vmem:[%s7] sm:$0xff] %vm312, %v309
    // Predicated region
    $region34: #{tpu_custom_call.1} parent=1 // pred_check
      _
    $region35: #{tpu_custom_call.1} parent=1 // pred_check_branch
      %315 = sbr.rel (0) target = $region37
    $region36: #{tpu_custom_call.1} parent=1 // pred_region
      _
    $region37: #{tpu_custom_call.1} parent=1 // pred_fallthru
      _
    // Predicated region
    $region38: #{tpu_custom_call.1} parent=1 // pred_check
      _
    $region39: #{tpu_custom_call.1} parent=1 // pred_check_branch
      %317 = sbr.rel (0) target = $region41
    $region40: #{tpu_custom_call.1} parent=1 // pred_region
      _
    $region41: #{tpu_custom_call.1} parent=1 // pred_fallthru
      _
    %318 = vsyncpa [#allocation3], 1

</llo_original>
